<compile_context>
chip_gen: v7x
topology: tpu7x:2x2x1
jax: 0.10.0
libtpu: 0.0.40
codegen_flags: <defaults>
</compile_context>

<pallas_src>
import jax
import jax.numpy as jnp
from jax.experimental import pallas as pl
from jax.experimental.pallas import tpu as pltpu


IN_FEATURES = 10   # layer0: Linear(10 -> 5)
HID_FEATURES = 5
OUT_FEATURES = 1   # layer1: Linear(5 -> 1)


def _round_up(n, m):
    return ((n + m - 1) // m) * m


def fused_mlp_kernel(params_ref, x_ref, o_ref):
    """Fused (10 -> 5 -> 1) affine map as 10 unrolled VPU multiply-adds.

    params_ref : SMEM (IN_FEATURES + 1,) f32 -- fused weights [0:10], fused bias [10]
    x_ref      : VMEM (TB, IN_FEATURES)      -- natural PyTorch (batch, feature) block
    o_ref      : VMEM (1, TB) f32            -- lane-dense output row (batch on lanes)
    """
    # Widen bf16 storage to f32 before any arithmetic (v5e has no bf16 VPU math).
    x = x_ref[...].astype(jnp.float32)            # (TB, 10)
    # In-kernel relayout: feature -> sublanes, batch -> lanes (XLU; hidden under DMA).
    xt = x.T                                      # (10, TB)
    tb = xt.shape[1]
    # K=10, N=1 would be >90% padding on the MXU; do 10 VPU MACs instead.
    acc = jnp.full((1, tb), params_ref[IN_FEATURES], dtype=jnp.float32)
    for k in range(IN_FEATURES):
        acc = acc + params_ref[k] * xt[k:k + 1, :]
    o_ref[...] = acc                              # unmasked, lane-dense store


def fuse_params(w0, b0, w1, b1):
    """Fold Linear(10,5) -> Linear(5,1) into one affine map.  Call once per weight set.

    l1 = (x @ w0.T + b0) @ w1.T + b1 = x @ (w0.T @ w1.T) + (b0 @ w1.T + b1)
    """
    w_eff = (w0.T @ w1.T).astype(jnp.float32)             # (10, 1)
    b_eff = (b0 @ w1.T + b1).astype(jnp.float32)          # (1, 1)
    return jnp.concatenate([w_eff[:, 0], b_eff[0]], axis=0)   # (11,) f32


def fused_mlp_forward(x, fused_params, *, lane_tile=16384):
    """Forward pass with pre-fused params.  x: (B, 10) f32 or bf16 -> (B, 1) f32."""
    assert lane_tile % 128 == 0 and lane_tile > 0, "lane_tile must be a multiple of 128"
    B, in_dim = x.shape
    assert in_dim == IN_FEATURES

    # Batch tile: lanes of the output block / sublanes of the input block.
    tb = min(lane_tile, _round_up(B, 128))
    if B >= 2048 and pl.cdiv(B, tb) == 1:
        # Large batch that would fit one block: split in two so the ("parallel",)
        # axis can be sharded across v7x's two TensorCores (harmless on v5e/v6e).
        tb = _round_up(pl.cdiv(B, 2), 128)
    nb = pl.cdiv(B, tb)

    # VMEM estimate: input block pads 10 -> 128 lanes (512*tb B), output pads 1 -> 8
    # sublanes (32*tb B); x2 double-buffering, plus slack. Only raise the scoped limit
    # above the 32 MiB default when actually needed (v7x physical VMEM is 64 MiB).
    est_vmem = 2 * (tb * 128 * 4) + 2 * (tb * 8 * 4) + (2 << 20)
    vmem_limit = est_vmem if est_vmem > (32 << 20) else None

    out = pl.pallas_call(
        fused_mlp_kernel,
        out_shape=jax.ShapeDtypeStruct((1, B), jnp.float32),
        grid=(nb,),
        in_specs=[
            # 11 fused f32 params -> SMEM (single tiny transfer, reused every step).
            pl.BlockSpec(memory_space=pltpu.MemorySpace.SMEM),
            # x in its natural (B, 10) layout: fully contiguous (tb, 10) HBM blocks.
            # The last block may be partial: OOB rows hold unspecified data, but each
            # batch row is independent (no cross-lane reductions) and the matching
            # OOB output lanes are dropped on writeback.
            pl.BlockSpec((tb, IN_FEATURES), lambda j: (j, 0)),
        ],
        out_specs=pl.BlockSpec((1, tb), lambda j: (0, j)),
        compiler_params=pltpu.CompilerParams(
            dimension_semantics=("parallel",),
            vmem_limit_bytes=vmem_limit,
        ),
    )(fused_params, x)

    # (1, B) -> (B, 1): order-preserving reshape, no data movement.
    return out.reshape(B, OUT_FEATURES)


def example_model_pallas(x, w0, b0, w1, b1, *, lane_tile=16384):
    """Forward pass of Linear(10,5) -> Linear(5,1) with PyTorch-layout params."""
    return fused_mlp_forward(x, fuse_params(w0, b0, w1, b1), lane_tile=lane_tile)


def init_params(key):
    # Deterministic init mirroring torch.nn.Linear default (uniform in +-1/sqrt(fan_in)).
    k0, k1, k2, k3 = jax.random.split(key, 4)
    bound0 = 1.0 / jnp.sqrt(10.0)
    bound1 = 1.0 / jnp.sqrt(5.0)
    w0 = jax.random.uniform(k0, (HID_FEATURES, IN_FEATURES), jnp.float32, -bound0, bound0)
    b0 = jax.random.uniform(k1, (1, HID_FEATURES), jnp.float32, -bound0, bound0)
    w1 = jax.random.uniform(k2, (OUT_FEATURES, HID_FEATURES), jnp.float32, -bound1, bound1)
    b1 = jax.random.uniform(k3, (1, OUT_FEATURES), jnp.float32, -bound1, bound1)
    return w0, b0, w1, b1


if __name__ == "__main__":
    key = jax.random.PRNGKey(0)
    w0, b0, w1, b1 = init_params(key)

    # Spec input: x = [[1, 2, ..., 10]] float32, shape (1, 10).
    x = jnp.arange(1, 11, dtype=jnp.float32).reshape(1, IN_FEATURES)
    out = jax.block_until_ready(example_model_pallas(x, w0, b0, w1, b1))
    ref = (x @ w0.T + b0) @ w1.T + b1
    assert out.shape == (1, 1)
    assert jnp.allclose(out, ref, atol=1e-5, rtol=1e-5), (out, ref)

    # Hoisted-params path (params fused once), larger non-tile-multiple batch:
    # exercises the multi-block grid with a partial last block, no wrapper pad/slice.
    params = fuse_params(w0, b0, w1, b1)
    fwd = jax.jit(lambda xb: fused_mlp_forward(xb, params, lane_tile=256))
    xb = jax.random.normal(jax.random.PRNGKey(1), (300, IN_FEATURES), jnp.float32)
    outb = jax.block_until_ready(fwd(xb))
    refb = (xb @ w0.T + b0) @ w1.T + b1
    assert outb.shape == (300, 1)
    assert jnp.allclose(outb, refb, atol=1e-4, rtol=1e-4), (outb, refb)

    # Optional bf16-storage input (halves HBM reads); kernel widens to f32 on load.
    xb16 = xb.astype(jnp.bfloat16)
    outb16 = jax.block_until_ready(fused_mlp_forward(xb16, params, lane_tile=256))
    refb16 = (xb16.astype(jnp.float32) @ w0.T + b0) @ w1.T + b1
    assert outb16.shape == (300, 1)
    assert jnp.allclose(outb16, refb16, atol=1e-3, rtol=1e-3), (outb16, refb16)

    print("KERNEL_OK")
</pallas_src>

<mosaic_0001>
module attributes {stable_mosaic.version = 11 : i64} {
  func.func @fused_mlp_kernel(%arg0: i32, %arg1: memref<11xf32, #tpu.memory_space<smem>>, %arg2: memref<128x10xf32, #tpu.memory_space<vmem>>, %arg3: memref<1x128xf32, #tpu.memory_space<vmem>>) attributes {dimension_semantics = [#tpu.dimension_semantics<parallel>], iteration_bounds = array<i64: 1>, scalar_prefetch = 0 : i64, scratch_operands = 0 : i64, tpu.core_type = #tpu.core_type<tc>, window_params = [{transform_indices = @transform_0, window_bounds = array<i64: 11>}, {transform_indices = @transform_1, window_bounds = array<i64: 128, 10>}, {transform_indices = @transform_2, window_bounds = array<i64: 1, 128>}]} {
    %c0 = arith.constant 0 : index
    %c0_0 = arith.constant 0 : index
    %0 = vector.load %arg2[%c0, %c0_0] : memref<128x10xf32, #tpu.memory_space<vmem>>, vector<128x10xf32>
    %1 = tpu.transpose %0, [1, 0] : vector<128x10xf32> -> vector<10x128xf32>
    %c10 = arith.constant 10 : index
    %2 = memref.load %arg1[%c10] : memref<11xf32, #tpu.memory_space<smem>>
    %3 = vector.broadcast %2 : f32 to vector<1x128xf32>
    %c0_1 = arith.constant 0 : index
    %4 = memref.load %arg1[%c0_1] : memref<11xf32, #tpu.memory_space<smem>>
    %5 = vector.extract_strided_slice %1 {offsets = [0, 0], sizes = [1, 128], strides = [1, 1]} : vector<10x128xf32> to vector<1x128xf32>
    %6 = vector.broadcast %4 : f32 to vector<1x128xf32>
    %7 = arith.mulf %6, %5 : vector<1x128xf32>
    %8 = arith.addf %3, %7 : vector<1x128xf32>
    %c1 = arith.constant 1 : index
    %9 = memref.load %arg1[%c1] : memref<11xf32, #tpu.memory_space<smem>>
    %10 = vector.extract_strided_slice %1 {offsets = [1, 0], sizes = [1, 128], strides = [1, 1]} : vector<10x128xf32> to vector<1x128xf32>
    %11 = vector.broadcast %9 : f32 to vector<1x128xf32>
    %12 = arith.mulf %11, %10 : vector<1x128xf32>
    %13 = arith.addf %8, %12 : vector<1x128xf32>
    %c2 = arith.constant 2 : index
    %14 = memref.load %arg1[%c2] : memref<11xf32, #tpu.memory_space<smem>>
    %15 = vector.extract_strided_slice %1 {offsets = [2, 0], sizes = [1, 128], strides = [1, 1]} : vector<10x128xf32> to vector<1x128xf32>
    %16 = vector.broadcast %14 : f32 to vector<1x128xf32>
    %17 = arith.mulf %16, %15 : vector<1x128xf32>
    %18 = arith.addf %13, %17 : vector<1x128xf32>
    %c3 = arith.constant 3 : index
    %19 = memref.load %arg1[%c3] : memref<11xf32, #tpu.memory_space<smem>>
    %20 = vector.extract_strided_slice %1 {offsets = [3, 0], sizes = [1, 128], strides = [1, 1]} : vector<10x128xf32> to vector<1x128xf32>
    %21 = vector.broadcast %19 : f32 to vector<1x128xf32>
    %22 = arith.mulf %21, %20 : vector<1x128xf32>
    %23 = arith.addf %18, %22 : vector<1x128xf32>
    %c4 = arith.constant 4 : index
    %24 = memref.load %arg1[%c4] : memref<11xf32, #tpu.memory_space<smem>>
    %25 = vector.extract_strided_slice %1 {offsets = [4, 0], sizes = [1, 128], strides = [1, 1]} : vector<10x128xf32> to vector<1x128xf32>
    %26 = vector.broadcast %24 : f32 to vector<1x128xf32>
    %27 = arith.mulf %26, %25 : vector<1x128xf32>
    %28 = arith.addf %23, %27 : vector<1x128xf32>
    %c5 = arith.constant 5 : index
    %29 = memref.load %arg1[%c5] : memref<11xf32, #tpu.memory_space<smem>>
    %30 = vector.extract_strided_slice %1 {offsets = [5, 0], sizes = [1, 128], strides = [1, 1]} : vector<10x128xf32> to vector<1x128xf32>
    %31 = vector.broadcast %29 : f32 to vector<1x128xf32>
    %32 = arith.mulf %31, %30 : vector<1x128xf32>
    %33 = arith.addf %28, %32 : vector<1x128xf32>
    %c6 = arith.constant 6 : index
    %34 = memref.load %arg1[%c6] : memref<11xf32, #tpu.memory_space<smem>>
    %35 = vector.extract_strided_slice %1 {offsets = [6, 0], sizes = [1, 128], strides = [1, 1]} : vector<10x128xf32> to vector<1x128xf32>
    %36 = vector.broadcast %34 : f32 to vector<1x128xf32>
    %37 = arith.mulf %36, %35 : vector<1x128xf32>
    %38 = arith.addf %33, %37 : vector<1x128xf32>
    %c7 = arith.constant 7 : index
    %39 = memref.load %arg1[%c7] : memref<11xf32, #tpu.memory_space<smem>>
    %40 = vector.extract_strided_slice %1 {offsets = [7, 0], sizes = [1, 128], strides = [1, 1]} : vector<10x128xf32> to vector<1x128xf32>
    %41 = vector.broadcast %39 : f32 to vector<1x128xf32>
    %42 = arith.mulf %41, %40 : vector<1x128xf32>
    %43 = arith.addf %38, %42 : vector<1x128xf32>
    %c8 = arith.constant 8 : index
    %44 = memref.load %arg1[%c8] : memref<11xf32, #tpu.memory_space<smem>>
    %45 = vector.extract_strided_slice %1 {offsets = [8, 0], sizes = [1, 128], strides = [1, 1]} : vector<10x128xf32> to vector<1x128xf32>
    %46 = vector.broadcast %44 : f32 to vector<1x128xf32>
    %47 = arith.mulf %46, %45 : vector<1x128xf32>
    %48 = arith.addf %43, %47 : vector<1x128xf32>
    %c9 = arith.constant 9 : index
    %49 = memref.load %arg1[%c9] : memref<11xf32, #tpu.memory_space<smem>>
    %50 = vector.extract_strided_slice %1 {offsets = [9, 0], sizes = [1, 128], strides = [1, 1]} : vector<10x128xf32> to vector<1x128xf32>
    %51 = vector.broadcast %49 : f32 to vector<1x128xf32>
    %52 = arith.mulf %51, %50 : vector<1x128xf32>
    %53 = arith.addf %48, %52 : vector<1x128xf32>
    %c0_2 = arith.constant 0 : index
    %c0_3 = arith.constant 0 : index
    %54 = vector.load %arg3[%c0_2, %c0_3] : memref<1x128xf32, #tpu.memory_space<vmem>>, vector<1x128xf32>
    tpu.vector_store %arg3[%c0_2, %c0_3], %53 {strides = array<i32>} : memref<1x128xf32, #tpu.memory_space<vmem>>, vector<1x128xf32>,
    return
  }
  func.func @transform_0(%arg0: i32) -> i32 {
    %c0_i32 = arith.constant 0 : i32
    %c0_i32_0 = arith.constant 0 : i32
    return %c0_i32 : i32
  }
  func.func @transform_1(%arg0: i32) -> (i32, i32) {
    %c0_i32 = arith.constant 0 : i32
    %c0_i32_0 = arith.constant 0 : i32
    return %arg0, %c0_i32 : i32, i32
  }
  func.func @transform_2(%arg0: i32) -> (i32, i32) {
    %c0_i32 = arith.constant 0 : i32
    %c0_i32_0 = arith.constant 0 : i32
    return %c0_i32, %arg0 : i32, i32
  }
}

</mosaic_0001>

<llo_original>
// kernel: tpu_custom_call.1
$region0: #{tpu_custom_call.1}
  #allocation0 [shape = 'u32[]', space=smem, size = 0x4, offset = 0x4, fixed_abs, tag = 'smem constant byte address 0x4 - core index']
  #allocation1 [shape = 'u32[144,128]{1,0:T(1,128)}', space=vmem, size = 0x12000, scoped, tag = 'internal scratch']
  %s0 = inlined_call_operand.hbm [shape: f32[11], index: 0, kind: input, shape index: {}]
  %s1 = inlined_call_operand.vmem [shape: f32[1,10], index: 1, kind: input, shape index: {}]
  %s2 = inlined_call_operand.hbm [shape: f32[1,1], index: 2, kind: output, shape index: {}]
  %s3 = sld [smem:[#allocation0]]
  $region22: #{tpu_custom_call.1} parent=0
    _
  %s5 = ssub.s32 1, %s3
  %s6 = scalar_select 0, %s5, %s3
  $region1: #{tpu_custom_call.1} parent=0
    #allocation2 [shape = 'u8[512]{0}', space=smem, size = 0x200, scoped, tag = 'input window, operand 0, single buffered']
    #allocation3 [shape = 's32[1]{0}', space=sflag, size = 0x4, scoped, tag = 'scoped memory for tpu_custom_call.1']
    #allocation4 [shape = 's32[1]{0}', space=sflag, size = 0x4, scoped, tag = 'scoped memory for tpu_custom_call.1']
    #allocation5 [shape = 'u8[512]{0}', space=vmem, size = 0x400, scoped, tag = 'output window, operand 0, single buffered']
    %7 = vsyncpa [#allocation4], 0
    %8 = vsyncpa [#allocation3], 0
    // Predicated region
    $region2: #{tpu_custom_call.1} parent=1 // pred_check
      _
    $region3: #{tpu_custom_call.1} parent=1 // pred_check_branch
      %10 = sbr.rel (0) target = $region5
    $region4: #{tpu_custom_call.1} parent=1 // pred_region
      %s12 = ssub.s32 16, 16
      %13 = vsyncadd [#allocation4], %s12
      %16 = dma.hbm_to_smem %s0, 16, [#allocation2], [#allocation4]
    $region5: #{tpu_custom_call.1} parent=1 // pred_fallthru
      _
    // Predicated region
    $region6: #{tpu_custom_call.1} parent=1 // pred_check
      _
    $region7: #{tpu_custom_call.1} parent=1 // pred_check_branch
      %18 = sbr.rel (0) target = $region9
    $region8: #{tpu_custom_call.1} parent=1 // pred_region
      _
    $region9: #{tpu_custom_call.1} parent=1 // pred_fallthru
      _
    // Predicated region
    $region10: #{tpu_custom_call.1} parent=1 // pred_check
      _
    $region11: #{tpu_custom_call.1} parent=1 // pred_check_branch
      %20 = sbr.rel (0) target = $region13
    $region12: #{tpu_custom_call.1} parent=1 // pred_region
      %21 = dma.done [#allocation4], 16
    $region13: #{tpu_custom_call.1} parent=1 // pred_fallthru
      _
    %22 = sfence
    %v23 = vld [vmem:[%s1] sm:$0xff]
    %v24 = vld [vmem:[%s1 + $0x8] sm:$0xff]
    %v25 = vld [vmem:[%s1 + $0x10] sm:$0xff]
    %v26 = vld [vmem:[%s1 + $0x18] sm:$0xff]
    %v27 = vld [vmem:[%s1 + $0x20] sm:$0xff]
    %v28 = vld [vmem:[%s1 + $0x28] sm:$0xff]
    %v29 = vld [vmem:[%s1 + $0x30] sm:$0xff]
    %v30 = vld [vmem:[%s1 + $0x38] sm:$0xff]
    %v31 = vld [vmem:[%s1 + $0x40] sm:$0xff]
    %v32 = vld [vmem:[%s1 + $0x48] sm:$0xff]
    %v33 = vld [vmem:[%s1 + $0x50] sm:$0xff]
    %v34 = vld [vmem:[%s1 + $0x58] sm:$0xff]
    %v35 = vld [vmem:[%s1 + $0x60] sm:$0xff]
    %v36 = vld [vmem:[%s1 + $0x68] sm:$0xff]
    %v37 = vld [vmem:[%s1 + $0x70] sm:$0xff]
    %v38 = vld [vmem:[%s1 + $0x78] sm:$0xff]
    %39 = vxpose.xlu0.b32.start [1/16] %v23, 128
    %40 = vxpose.xlu0.b32.cont [2/16] %v24, 128
    %41 = vxpose.xlu0.b32.cont [3/16] %v25, 128
    %42 = vxpose.xlu0.b32.cont [4/16] %v26, 128
    %43 = vxpose.xlu0.b32.cont [5/16] %v27, 128
    %44 = vxpose.xlu0.b32.cont [6/16] %v28, 128
    %45 = vxpose.xlu0.b32.cont [7/16] %v29, 128
    %46 = vxpose.xlu0.b32.cont [8/16] %v30, 128
    %47 = vxpose.xlu0.b32.cont [9/16] %v31, 128
    %48 = vxpose.xlu0.b32.cont [10/16] %v32, 128
    %49 = vxpose.xlu0.b32.cont [11/16] %v33, 128
    %50 = vxpose.xlu0.b32.cont [12/16] %v34, 128
    %51 = vxpose.xlu0.b32.cont [13/16] %v35, 128
    %52 = vxpose.xlu0.b32.cont [14/16] %v36, 128
    %53 = vxpose.xlu0.b32.cont [15/16] %v37, 128
    %54 = vxpose.xlu0.b32.end [16/16] %v38, 128
    %v55 = vpop.trf.xlu0
    %v56 = vpop.trf.xlu0
    %v57 = vpop.trf.xlu0
    %v58 = vpop.trf.xlu0
    %v59 = vpop.trf.xlu0
    %v60 = vpop.trf.xlu0
    %v61 = vpop.trf.xlu0
    %v62 = vpop.trf.xlu0
    %v63 = vpop.trf.xlu0
    %v64 = vpop.trf.xlu0
    %v65 = vpop.trf.xlu0
    %v66 = vpop.trf.xlu0
    %v67 = vpop.trf.xlu0
    %v68 = vpop.trf.xlu0
    %v69 = vpop.trf.xlu0
    %v70 = vpop.trf.xlu0
    %s71 = sld [smem:[#allocation2 + $0xa]]
    %v72 = vstv %s71
    %s73 = sld [smem:[#allocation2]]
    %v74 = vstv %s73
    %v75 = vmul.f32 %v74, %v55
    %v76 = vadd.f32 %v72, %v75
    %s77 = sld [smem:[#allocation2 + $0x1]]
    %v78 = vstv %s77
    %v79 = vmul.f32 %v78, %v55
    %v81 = vrot.slane %v79, 1
    %v83 = vadd.f32 %v76, %v81
    %s84 = sld [smem:[#allocation2 + $0x2]]
    %v85 = vstv %s84
    %v86 = vmul.f32 %v85, %v55
    %v88 = vrot.slane %v86, 2
    %v90 = vadd.f32 %v83, %v88
    %s91 = sld [smem:[#allocation2 + $0x3]]
    %v92 = vstv %s91
    %v93 = vmul.f32 %v92, %v55
    %v95 = vrot.slane %v93, 3
    %v97 = vadd.f32 %v90, %v95
    %s98 = sld [smem:[#allocation2 + $0x4]]
    %v99 = vstv %s98
    %v100 = vmul.f32 %v99, %v55
    %v102 = vrot.slane %v100, 4
    %v104 = vadd.f32 %v97, %v102
    %s105 = sld [smem:[#allocation2 + $0x5]]
    %v106 = vstv %s105
    %v107 = vmul.f32 %v106, %v55
    %v109 = vrot.slane %v107, 5
    %v111 = vadd.f32 %v104, %v109
    %s112 = sld [smem:[#allocation2 + $0x6]]
    %v113 = vstv %s112
    %v114 = vmul.f32 %v113, %v55
    %v116 = vrot.slane %v114, 6
    %v118 = vadd.f32 %v111, %v116
    %s119 = sld [smem:[#allocation2 + $0x7]]
    %v120 = vstv %s119
    %v121 = vmul.f32 %v120, %v55
    %v123 = vrot.slane %v121, 7
    %v125 = vadd.f32 %v118, %v123
    %s126 = sld [smem:[#allocation2 + $0x8]]
    %v127 = vstv %s126
    %v128 = vmul.f32 %v127, %v56
    %v129 = vadd.f32 %v125, %v128
    %s130 = sld [smem:[#allocation2 + $0x9]]
    %v131 = vstv %s130
    %v132 = vmul.f32 %v131, %v56
    %v134 = vrot.slane %v132, 1
    %v136 = vadd.f32 %v129, %v134
    %137 = vst [vmem:[#allocation5] sm:$0x1] %v136
    // Predicated region
    $region14: #{tpu_custom_call.1} parent=1 // pred_check
      _
    $region15: #{tpu_custom_call.1} parent=1 // pred_check_branch
      %139 = sbr.rel (0) target = $region17
    $region16: #{tpu_custom_call.1} parent=1 // pred_region
      %s141 = ssub.s32 16, 16
      %142 = vsyncadd [#allocation3], %s141
      %s144 = sshll.u32 [#allocation5], 4
      %s145 = int_to_ptr.vmem [resolvable:$true] %s144
      %147 = dma.vmem_to_hbm [thread:$0]  %s145, 16, %s2, [#allocation3]
    $region17: #{tpu_custom_call.1} parent=1 // pred_fallthru
      _
    // Predicated region
    $region18: #{tpu_custom_call.1} parent=1 // pred_check
      _
    $region19: #{tpu_custom_call.1} parent=1 // pred_check_branch
      %149 = sbr.rel (0) target = $region21
    $region20: #{tpu_custom_call.1} parent=1 // pred_region
      %150 = dma.done [#allocation3], 16
    $region21: #{tpu_custom_call.1} parent=1 // pred_fallthru
      _
    %151 = vsyncpa [#allocation3], 1
    %152 = vsyncpa [#allocation4], 1

</llo_original>
